<compile_context>
chip_gen: v5e
topology: v5e:2x2
jax: 0.10.0
libtpu: 0.0.40
codegen_flags: <defaults>
</compile_context>

<pallas_src>
import functools

import jax
import jax.numpy as jnp
from jax.experimental import pallas as pl
from jax.experimental.pallas import tpu as pltpu


def _triplet_loss_kernel(a_ref, p_ref, n_ref, o_ref, *, margin, batch, tile_b):
    i = pl.program_id(0)

    a = a_ref[...].astype(jnp.float32)
    p = p_ref[...].astype(jnp.float32)
    n = n_ref[...].astype(jnp.float32)

    eps = jnp.float32(1e-6)  # F.pairwise_distance default eps (added to the diff)

    # Squared L2 magnitudes over the feature (lane) dim.
    a_sq = jnp.sum(a * a, axis=1, keepdims=True)
    p_sq = jnp.sum(p * p, axis=1, keepdims=True)
    n_sq = jnp.sum(n * n, axis=1, keepdims=True)

    # F.pairwise_distance(x1, x2, p=2, eps=1e-6) == ||x1 - x2 + eps||_2 over dim 1.
    dpos = a - p + eps
    dneg = a - n + eps
    pos_sq = jnp.sum(dpos * dpos, axis=1, keepdims=True)
    neg_sq = jnp.sum(dneg * dneg, axis=1, keepdims=True)

    max1_sq = jnp.maximum(a_sq, p_sq)
    max2_sq = jnp.maximum(a_sq, n_sq)

    # sqrt(pos_sq)/sqrt(max_sq) == sqrt(pos_sq/max_sq): 2 sqrt + 2 div, not 5 + 2.
    pos_dist = jnp.sqrt(pos_sq / max1_sq)
    neg_dist = jnp.sqrt(neg_sq / max2_sq)

    loss = jnp.maximum(pos_dist - neg_dist + jnp.float32(margin), 0.0)

    # Mask rows past the true batch size BEFORE reducing (last tile may be padded
    # and the padded rows can contain NaN/Inf from the div/sqrt above).
    row = i * tile_b + jax.lax.broadcasted_iota(jnp.int32, loss.shape, 0)
    loss = jnp.where(row < batch, loss, 0.0)

    # Per-tile partial sum; the wrapper does the single divide by B.
    o_ref[0, 0] = jnp.sum(loss)


_FALLBACK_SCOPED_VMEM = 32 * 1024 * 1024  # safe on every generation's physical VMEM


def _derive_vmem_limit_bytes():
    """Scoped-VMEM limit tied to the generation's physical VMEM (with headroom)."""
    try:
        cap = pltpu.get_tpu_info().vmem_capacity_bytes
        if cap:
            # Use at most half the physical VMEM (v5e/v6e 128 MiB -> 64 MiB,
            # v7x 64 MiB -> 32 MiB), never above 64 MiB scoped.
            return int(min(cap // 2, 64 * 1024 * 1024))
    except Exception:  # not on TPU / API unavailable (interpret mode, tests)
        pass
    return _FALLBACK_SCOPED_VMEM


def _round_up(x, m):
    return ((x + m - 1) // m) * m


def _pick_batch_tile(batch, dim, itemsize, vmem_limit_bytes):
    """Largest legal batch tile whose *real* VMEM footprint fits the limit.

    Per tile-row footprint:
      * 3 inputs x 2 pipeline buffers (Buffered(2)) : 6 * D * itemsize bytes
      * ~6 live f32 (TB, D) intermediates
        (a/p/n upcasts, dpos, dneg, current square) : 24 * D bytes
    """
    sublane = max(8, 32 // max(itemsize, 1))  # 8 for f32, 16 for bf16, 32 for i8
    budget = int(vmem_limit_bytes * 0.75)     # headroom for scalars / epilogue
    per_row = 6 * dim * itemsize + 24 * dim
    tb = budget // max(per_row, 1)
    tb = (tb // sublane) * sublane
    tb = max(tb, sublane)

    # v7x megacore: guarantee >= 2 grid steps whenever a legal split exists so
    # the "parallel" axis can shard across both TensorCores (harmless on
    # single-TC v5e/v6e; this kernel is HBM-bound so smaller tiles cost ~nothing
    # once they are past the roofline plateau).
    half_tile = _round_up(pl.cdiv(batch, 2), sublane)
    if half_tile < batch:
        tb = min(tb, half_tile)

    if tb >= batch:
        return batch  # single full-batch block (full-extent block is always legal)
    return tb


def triplet_loss(anchor, positive, negative, margin=2.0, tile_b=None):
    """Scalar f32 loss matching TripletLoss(margin).forward semantics."""
    assert anchor.shape == positive.shape == negative.shape
    assert anchor.ndim == 2, "expected (B, D) embeddings"
    B, D = anchor.shape
    itemsize = jnp.dtype(anchor.dtype).itemsize

    vmem_limit = _derive_vmem_limit_bytes()
    if tile_b is None:
        tile_b = _pick_batch_tile(B, D, itemsize, vmem_limit)
    num_tiles = pl.cdiv(B, tile_b)

    kernel = functools.partial(
        _triplet_loss_kernel, margin=float(margin), batch=B, tile_b=tile_b
    )

    in_spec = pl.BlockSpec((tile_b, D), lambda i: (i, 0))
    partials = pl.pallas_call(
        kernel,
        out_shape=jax.ShapeDtypeStruct((num_tiles, 1), jnp.float32),
        grid=(num_tiles,),
        in_specs=[in_spec, in_spec, in_spec],
        out_specs=pl.BlockSpec(
            (1, 1), lambda i: (i, 0), memory_space=pltpu.MemorySpace.SMEM
        ),
        compiler_params=pltpu.CompilerParams(
            dimension_semantics=("parallel",),
            vmem_limit_bytes=vmem_limit,
        ),
        cost_estimate=pl.CostEstimate(
            flops=13 * B * D,
            transcendentals=4 * B,
            bytes_accessed=3 * B * D * itemsize + 4 * num_tiles,
        ),
    )(anchor, positive, negative)

    return jnp.sum(partials) / jnp.float32(B)


def _triplet_loss_ref(anchor, positive, negative, margin=2.0):
    """Pure-JAX reference mirroring the PyTorch module (compute in f32)."""
    a = anchor.astype(jnp.float32)
    p = positive.astype(jnp.float32)
    n = negative.astype(jnp.float32)
    eps = 1e-6
    a_mag = jnp.linalg.norm(a, axis=1, keepdims=True)
    p_mag = jnp.linalg.norm(p, axis=1, keepdims=True)
    n_mag = jnp.linalg.norm(n, axis=1, keepdims=True)
    max1 = jnp.maximum(a_mag, p_mag)
    max2 = jnp.maximum(a_mag, n_mag)
    pos_dist = jnp.linalg.norm(a - p + eps, axis=1, keepdims=True) / max1
    neg_dist = jnp.linalg.norm(a - n + eps, axis=1, keepdims=True) / max2
    return jnp.mean(jnp.maximum(pos_dist - neg_dist + margin, 0.0))


if __name__ == "__main__":
    key = jax.random.PRNGKey(0)

    # Test 1: small f32 embeddings, auto tile (single-tile path for tiny B).
    B, D = 8, 128
    ka, kp, kn, key = jax.random.split(key, 4)
    anchor = jax.random.normal(ka, (B, D), dtype=jnp.float32)
    positive = jax.random.normal(kp, (B, D), dtype=jnp.float32)
    negative = jax.random.normal(kn, (B, D), dtype=jnp.float32)
    loss = jax.block_until_ready(triplet_loss(anchor, positive, negative, margin=2.0))
    ref = _triplet_loss_ref(anchor, positive, negative, margin=2.0)
    assert jnp.allclose(loss, ref, atol=1e-5, rtol=1e-5), (loss, ref)

    # Test 2: B not a multiple of the tile -> multi-tile + last-tile row masking.
    B2, D2, TB2 = 20, 256, 8
    ka, kp, kn, key = jax.random.split(key, 4)
    a2 = jax.random.normal(ka, (B2, D2), dtype=jnp.float32)
    p2 = jax.random.normal(kp, (B2, D2), dtype=jnp.float32)
    n2 = jax.random.normal(kn, (B2, D2), dtype=jnp.float32)
    loss2 = jax.block_until_ready(triplet_loss(a2, p2, n2, margin=2.0, tile_b=TB2))
    ref2 = _triplet_loss_ref(a2, p2, n2, margin=2.0)
    assert jnp.allclose(loss2, ref2, atol=1e-5, rtol=1e-5), (loss2, ref2)

    # Test 3: bf16 inputs (half the HBM traffic), explicit multi-tile path.
    B3, D3, TB3 = 32, 128, 16
    ka, kp, kn, key = jax.random.split(key, 4)
    a3 = jax.random.normal(ka, (B3, D3), dtype=jnp.bfloat16)
    p3 = jax.random.normal(kp, (B3, D3), dtype=jnp.bfloat16)
    n3 = jax.random.normal(kn, (B3, D3), dtype=jnp.bfloat16)
    loss3 = jax.block_until_ready(triplet_loss(a3, p3, n3, margin=2.0, tile_b=TB3))
    ref3 = _triplet_loss_ref(a3, p3, n3, margin=2.0)
    assert jnp.allclose(loss3, ref3, atol=1e-5, rtol=1e-5), (loss3, ref3)

    # Test 4: auto tile with B large enough that the >=2-grid-step cap kicks in.
    B4, D4 = 64, 256
    ka, kp, kn, key = jax.random.split(key, 4)
    a4 = jax.random.normal(ka, (B4, D4), dtype=jnp.float32)
    p4 = jax.random.normal(kp, (B4, D4), dtype=jnp.float32)
    n4 = jax.random.normal(kn, (B4, D4), dtype=jnp.float32)
    assert _pick_batch_tile(B4, D4, 4, _derive_vmem_limit_bytes()) < B4
    loss4 = jax.block_until_ready(triplet_loss(a4, p4, n4, margin=2.0))
    ref4 = _triplet_loss_ref(a4, p4, n4, margin=2.0)
    assert jnp.allclose(loss4, ref4, atol=1e-5, rtol=1e-5), (loss4, ref4)

    print("KERNEL_OK")
</pallas_src>

<mosaic_0001>
module attributes {stable_mosaic.version = 11 : i64} {
  func.func @_triplet_loss_kernel(%arg0: i32, %arg1: memref<8x128xf32, #tpu.memory_space<vmem>>, %arg2: memref<8x128xf32, #tpu.memory_space<vmem>>, %arg3: memref<8x128xf32, #tpu.memory_space<vmem>>, %arg4: memref<1x1xf32, #tpu.memory_space<smem>>) attributes {dimension_semantics = [#tpu.dimension_semantics<parallel>], iteration_bounds = array<i64: 1>, scalar_prefetch = 0 : i64, scratch_operands = 0 : i64, tpu.core_type = #tpu.core_type<tc>, window_params = [{transform_indices = @transform_0, window_bounds = array<i64: 8, 128>}, {transform_indices = @transform_1, window_bounds = array<i64: 8, 128>}, {transform_indices = @transform_2, window_bounds = array<i64: 8, 128>}, {transform_indices = @transform_3, window_bounds = array<i64: 1, 1>}]} {
    %c0 = arith.constant 0 : index
    %c0_0 = arith.constant 0 : index
    %0 = vector.load %arg1[%c0, %c0_0] : memref<8x128xf32, #tpu.memory_space<vmem>>, vector<8x128xf32>
    %c0_1 = arith.constant 0 : index
    %c0_2 = arith.constant 0 : index
    %1 = vector.load %arg2[%c0_1, %c0_2] : memref<8x128xf32, #tpu.memory_space<vmem>>, vector<8x128xf32>
    %c0_3 = arith.constant 0 : index
    %c0_4 = arith.constant 0 : index
    %2 = vector.load %arg3[%c0_3, %c0_4] : memref<8x128xf32, #tpu.memory_space<vmem>>, vector<8x128xf32>
    %3 = arith.mulf %0, %0 : vector<8x128xf32>
    %cst = arith.constant dense<0.000000e+00> : vector<8xf32>
    %4 = vector.multi_reduction <add>, %3, %cst [1] : vector<8x128xf32> to vector<8xf32>
    %5 = vector.shape_cast %4 : vector<8xf32> to vector<8x1xf32>
    %6 = arith.mulf %1, %1 : vector<8x128xf32>
    %cst_5 = arith.constant dense<0.000000e+00> : vector<8xf32>
    %7 = vector.multi_reduction <add>, %6, %cst_5 [1] : vector<8x128xf32> to vector<8xf32>
    %8 = vector.shape_cast %7 : vector<8xf32> to vector<8x1xf32>
    %9 = arith.mulf %2, %2 : vector<8x128xf32>
    %cst_6 = arith.constant dense<0.000000e+00> : vector<8xf32>
    %10 = vector.multi_reduction <add>, %9, %cst_6 [1] : vector<8x128xf32> to vector<8xf32>
    %11 = vector.shape_cast %10 : vector<8xf32> to vector<8x1xf32>
    %12 = arith.subf %0, %1 : vector<8x128xf32>
    %cst_7 = arith.constant 9.99999997E-7 : f32
    %13 = vector.broadcast %cst_7 : f32 to vector<8x128xf32>
    %14 = arith.addf %12, %13 : vector<8x128xf32>
    %15 = arith.subf %0, %2 : vector<8x128xf32>
    %cst_8 = arith.constant 9.99999997E-7 : f32
    %16 = vector.broadcast %cst_8 : f32 to vector<8x128xf32>
    %17 = arith.addf %15, %16 : vector<8x128xf32>
    %18 = arith.mulf %14, %14 : vector<8x128xf32>
    %cst_9 = arith.constant dense<0.000000e+00> : vector<8xf32>
    %19 = vector.multi_reduction <add>, %18, %cst_9 [1] : vector<8x128xf32> to vector<8xf32>
    %20 = vector.shape_cast %19 : vector<8xf32> to vector<8x1xf32>
    %21 = arith.mulf %17, %17 : vector<8x128xf32>
    %cst_10 = arith.constant dense<0.000000e+00> : vector<8xf32>
    %22 = vector.multi_reduction <add>, %21, %cst_10 [1] : vector<8x128xf32> to vector<8xf32>
    %23 = vector.shape_cast %22 : vector<8xf32> to vector<8x1xf32>
    %24 = arith.maximumf %5, %8 : vector<8x1xf32>
    %25 = arith.maximumf %5, %11 : vector<8x1xf32>
    %26 = arith.divf %20, %24 : vector<8x1xf32>
    %27 = math.sqrt %26 : vector<8x1xf32>
    %28 = arith.divf %23, %25 : vector<8x1xf32>
    %29 = math.sqrt %28 : vector<8x1xf32>
    %30 = arith.subf %27, %29 : vector<8x1xf32>
    %cst_11 = arith.constant 2.000000e+00 : f32
    %31 = vector.broadcast %cst_11 : f32 to vector<8x1xf32>
    %32 = arith.addf %30, %31 : vector<8x1xf32>
    %cst_12 = arith.constant 0.000000e+00 : f32
    %33 = vector.broadcast %cst_12 : f32 to vector<8x1xf32>
    %34 = arith.maximumf %32, %33 : vector<8x1xf32>
    %c8_i32 = arith.constant 8 : i32
    %35 = arith.muli %arg0, %c8_i32 : i32
    %36 = tpu.iota {dimensions = array<i32: 0>} : vector<8x1xi32>
    %37 = vector.broadcast %35 : i32 to vector<8x1xi32>
    %38 = arith.addi %37, %36 : vector<8x1xi32>
    %c8_i32_13 = arith.constant 8 : i32
    %39 = vector.broadcast %c8_i32_13 : i32 to vector<8x1xi32>
    %40 = arith.cmpi slt, %38, %39 : vector<8x1xi32>
    %cst_14 = arith.constant 0.000000e+00 : f32
    %41 = vector.broadcast %cst_14 : f32 to vector<8x1xf32>
    %42 = arith.select %40, %34, %41 : vector<8x1xi1>, vector<8x1xf32>
    %43 = vector.shape_cast %42 : vector<8x1xf32> to vector<1x8x1xf32>
    %cst_15 = arith.constant dense<0.000000e+00> : vector<1xf32>
    %44 = vector.multi_reduction <add>, %43, %cst_15 [1, 2] : vector<1x8x1xf32> to vector<1xf32>
    %45 = vector.shape_cast %44 : vector<1xf32> to vector<1x1x1xf32>
    %46 = vector.extract %45[0, 0, 0] : f32 from vector<1x1x1xf32>
    %c0_16 = arith.constant 0 : index
    %c0_17 = arith.constant 0 : index
    %47 = memref.load %arg4[%c0_16, %c0_17] : memref<1x1xf32, #tpu.memory_space<smem>>
    memref.store %46, %arg4[%c0_16, %c0_17] : memref<1x1xf32, #tpu.memory_space<smem>>
    return
  }
  func.func @transform_0(%arg0: i32) -> (i32, i32) {
    %c0_i32 = arith.constant 0 : i32
    %c0_i32_0 = arith.constant 0 : i32
    return %arg0, %c0_i32 : i32, i32
  }
  func.func @transform_1(%arg0: i32) -> (i32, i32) {
    %c0_i32 = arith.constant 0 : i32
    %c0_i32_0 = arith.constant 0 : i32
    return %arg0, %c0_i32 : i32, i32
  }
  func.func @transform_2(%arg0: i32) -> (i32, i32) {
    %c0_i32 = arith.constant 0 : i32
    %c0_i32_0 = arith.constant 0 : i32
    return %arg0, %c0_i32 : i32, i32
  }
  func.func @transform_3(%arg0: i32) -> (i32, i32) {
    %c0_i32 = arith.constant 0 : i32
    %c0_i32_0 = arith.constant 0 : i32
    return %arg0, %c0_i32 : i32, i32
  }
}

</mosaic_0001>

<llo_original>
// kernel: tpu_custom_call.1
$region0: #{tpu_custom_call.1}
  #allocation0 [shape = 'u32[]', space=smem, size = 0x4, offset = 0x4, fixed_abs, tag = 'smem constant byte address 0x4 - core index']
  #allocation1 [shape = 'u32[72,128]{1,0:T(1,128)}', space=vmem, size = 0x9000, scoped, tag = 'internal scratch']
  %s0 = inlined_call_operand.hbm [shape: f32[8,128], index: 0, kind: input, shape index: {}]
  %s1 = inlined_call_operand.hbm [shape: f32[8,128], index: 1, kind: input, shape index: {}]
  %s2 = inlined_call_operand.hbm [shape: f32[8,128], index: 2, kind: input, shape index: {}]
  %s3 = inlined_call_operand.hbm [shape: f32[1,1], index: 3, kind: output, shape index: {}]
  %s4 = sld [smem:[#allocation0]]
  $region34: #{tpu_custom_call.1} parent=0
    _
  %s6 = ssub.s32 1, %s4
  %s7 = scalar_select 0, %s6, %s4
  $region1: #{tpu_custom_call.1} parent=0
    #allocation2 [shape = 'u8[4096]{0}', space=vmem, size = 0x1000, scoped, tag = 'input window, operand 0, single buffered']
    #allocation3 [shape = 's32[1]{0}', space=sflag, size = 0x4, scoped, tag = 'scoped memory for tpu_custom_call.1']
    #allocation4 [shape = 's32[1]{0}', space=sflag, size = 0x4, scoped, tag = 'scoped memory for tpu_custom_call.1']
    #allocation5 [shape = 'u8[4096]{0}', space=vmem, size = 0x1000, scoped, tag = 'input window, operand 1, single buffered']
    #allocation6 [shape = 's32[1]{0}', space=sflag, size = 0x4, scoped, tag = 'scoped memory for tpu_custom_call.1']
    #allocation7 [shape = 'u8[4096]{0}', space=vmem, size = 0x1000, scoped, tag = 'input window, operand 2, single buffered']
    #allocation8 [shape = 'u8[512]{0}', space=smem, size = 0x200, scoped, tag = 'output window, operand 0, single buffered']
    %8 = vsyncpa [#allocation3], 0
    %9 = vsyncpa [#allocation6], 0
    %10 = vsyncpa [#allocation4], 0
    // Predicated region
    $region2: #{tpu_custom_call.1} parent=1 // pred_check
      _
    $region3: #{tpu_custom_call.1} parent=1 // pred_check_branch
      %12 = sbr.rel (0) target = $region5
    $region4: #{tpu_custom_call.1} parent=1 // pred_region
      %14 = vsyncadd [#allocation3], 0
      %s16 = sshll.u32 %s0, 4
      %s17 = int_to_ptr.hbm [resolvable:$true] %s16
      %s18 = sshll.u32 [#allocation2], 4
      %s19 = int_to_ptr.vmem [resolvable:$true] %s18
      %21 = dma.hbm_to_vmem [thread:$0]  %s17, 128, %s19, [#allocation3]
    $region5: #{tpu_custom_call.1} parent=1 // pred_fallthru
      _
    // Predicated region
    $region6: #{tpu_custom_call.1} parent=1 // pred_check
      _
    $region7: #{tpu_custom_call.1} parent=1 // pred_check_branch
      %23 = sbr.rel (0) target = $region9
    $region8: #{tpu_custom_call.1} parent=1 // pred_region
      %25 = vsyncadd [#allocation6], 0
      %s27 = sshll.u32 %s1, 4
      %s28 = int_to_ptr.hbm [resolvable:$true] %s27
      %s29 = sshll.u32 [#allocation5], 4
      %s30 = int_to_ptr.vmem [resolvable:$true] %s29
      %32 = dma.hbm_to_vmem [thread:$0]  %s28, 128, %s30, [#allocation6]
    $region9: #{tpu_custom_call.1} parent=1 // pred_fallthru
      _
    // Predicated region
    $region10: #{tpu_custom_call.1} parent=1 // pred_check
      _
    $region11: #{tpu_custom_call.1} parent=1 // pred_check_branch
      %34 = sbr.rel (0) target = $region13
    $region12: #{tpu_custom_call.1} parent=1 // pred_region
      %36 = vsyncadd [#allocation6], 0
      %s38 = sshll.u32 %s2, 4
      %s39 = int_to_ptr.hbm [resolvable:$true] %s38
      %s40 = sshll.u32 [#allocation7], 4
      %s41 = int_to_ptr.vmem [resolvable:$true] %s40
      %43 = dma.hbm_to_vmem [thread:$0]  %s39, 128, %s41, [#allocation6]
    $region13: #{tpu_custom_call.1} parent=1 // pred_fallthru
      _
    // Predicated region
    $region14: #{tpu_custom_call.1} parent=1 // pred_check
      _
    $region15: #{tpu_custom_call.1} parent=1 // pred_check_branch
      %45 = sbr.rel (0) target = $region17
    $region16: #{tpu_custom_call.1} parent=1 // pred_region
      %47 = dma.done [#allocation3], 128
    $region17: #{tpu_custom_call.1} parent=1 // pred_fallthru
      _
    // Predicated region
    $region18: #{tpu_custom_call.1} parent=1 // pred_check
      _
    $region19: #{tpu_custom_call.1} parent=1 // pred_check_branch
      %49 = sbr.rel (0) target = $region21
    $region20: #{tpu_custom_call.1} parent=1 // pred_region
      %51 = dma.done [#allocation6], 128
    $region21: #{tpu_custom_call.1} parent=1 // pred_fallthru
      _
    // Predicated region
    $region22: #{tpu_custom_call.1} parent=1 // pred_check
      _
    $region23: #{tpu_custom_call.1} parent=1 // pred_check_branch
      %53 = sbr.rel (0) target = $region25
    $region24: #{tpu_custom_call.1} parent=1 // pred_region
      %55 = dma.done [#allocation6], 128
    $region25: #{tpu_custom_call.1} parent=1 // pred_fallthru
      _
    %v56 = vld [vmem:[#allocation2] sm:$0xff]
    %v57 = vld [vmem:[#allocation5] sm:$0xff]
    %v58 = vld [vmem:[#allocation7] sm:$0xff]
    %v59 = vmul.f32 %v56, %v56
    %60 = vadd.xlane.f32.xlu0 %v59
    %v61 = vpop.xlane.xlu0 %60
    %v62 = vmul.f32 %v57, %v57
    %63 = vadd.xlane.f32.xlu0 %v62
    %v64 = vpop.xlane.xlu0 %63
    %v65 = vmul.f32 %v58, %v58
    %66 = vadd.xlane.f32.xlu0 %v65
    %v67 = vpop.xlane.xlu0 %66
    %v68 = vsub.f32 %v56, %v57
    %v69 = vadd.f32 %v68, 1e-06
    %v70 = vsub.f32 %v56, %v58
    %v71 = vadd.f32 %v70, 1e-06
    %v72 = vmul.f32 %v69, %v69
    %73 = vadd.xlane.f32.xlu0 %v72
    %v74 = vpop.xlane.xlu0 %73
    %v75 = vmul.f32 %v71, %v71
    %76 = vadd.xlane.f32.xlu0 %v75
    %v77 = vpop.xlane.xlu0 %76
    %v78 = vmax.f32 %v61, %v64
    %v79 = vmax.f32 %v61, %v67
    %v80 = vrcp.pop %v78
    %v81 = vmul.f32 %v78, %v80
    %v82 = vsub.f32 1.0, %v81
    %v83 = vmul.f32 %v80, %v82
    %v84 = vadd.f32 %v80, %v83
    %vm85 = vweird.f32 %v78
    %vm86 = vweird.f32 %v80
    %vm87 = vmor %vm85, %vm86
    %v88 = vsel %vm87, %v80, %v84
    %v89 = vand.u32 2147483647, %v78
    %vm90 = vcmp.eq.f32.partialorder %v89, 8.507059e+37
    %v91 = vand.u32 %v78, 2147483648
    %v92 = vor.u32 1.1754944e-38, %v91
    %v93 = vsel %vm90, %v92, %v88
    %v94 = vmul.f32 %v74, %v93
    %v95 = vrsqrt.pop %v94
    %v96 = vmul.f32 %v95, %v94
    %v97 = vmul.f32 %v96, %v95
    %v98 = vmul.f32 0.5, %v97
    %v99 = vsub.f32 1.5, %v98
    %v100 = vmul.f32 %v95, %v99
    %v101 = vmul.f32 %v94, %v100
    %vm102 = vcmp.eq.f32.partialorder %v94, inf
    %v103 = vsel %vm102, %v94, %v101
    %vm104 = vcmp.eq.f32.partialorder %v94, 0.0
    %v105 = vand.u32 %v94, 2147483648
    %v106 = vsel %vm104, %v105, %v103
    %v107 = vrcp.pop %v79
    %v108 = vmul.f32 %v79, %v107
    %v109 = vsub.f32 1.0, %v108
    %v110 = vmul.f32 %v107, %v109
    %v111 = vadd.f32 %v107, %v110
    %vm112 = vweird.f32 %v79
    %vm113 = vweird.f32 %v107
    %vm114 = vmor %vm112, %vm113
    %v115 = vsel %vm114, %v107, %v111
    %v116 = vand.u32 2147483647, %v79
    %vm117 = vcmp.eq.f32.partialorder %v116, 8.507059e+37
    %v118 = vand.u32 %v79, 2147483648
    %v119 = vor.u32 1.1754944e-38, %v118
    %v120 = vsel %vm117, %v119, %v115
    %v121 = vmul.f32 %v77, %v120
    %v122 = vrsqrt.pop %v121
    %v123 = vmul.f32 %v122, %v121
    %v124 = vmul.f32 %v123, %v122
    %v125 = vmul.f32 0.5, %v124
    %v126 = vsub.f32 1.5, %v125
    %v127 = vmul.f32 %v122, %v126
    %v128 = vmul.f32 %v121, %v127
    %vm129 = vcmp.eq.f32.partialorder %v121, inf
    %v130 = vsel %vm129, %v121, %v128
    %vm131 = vcmp.eq.f32.partialorder %v121, 0.0
    %v132 = vand.u32 %v121, 2147483648
    %v133 = vsel %vm131, %v132, %v130
    %v134 = vsub.f32 %v106, %v133
    %v135 = vadd.f32 %v134, 2.0
    %v136 = vmax.f32 %v135, 0.0
    %s137 = smul.u32 0, 8
    %v138 = vlaneseq
    %v139 = vshrl.u32 %v138, 7
    %v140 = vstv %s137
    %v141 = vadd.s32 %v140, %v139
    %vm142 = vcmp.lt.s32.totalorder %v141, 8
    %v143 = vsel %vm142, %v136, 0.0
    %vm144 = vcmask 7168
    %v145 = vsel %vm144, %v143, 0.0
    %146 = vadd.xlane.f32.xlu0 %v145
    %v147 = vpop.xlane.xlu0 %146
    %v148 = vrot.slane %v147, 4
    %v149 = vadd.f32 %v147, %v148
    %v150 = vrot.slane %v149, 2
    %v151 = vadd.f32 %v149, %v150
    %v152 = vrot.slane %v151, 1
    %v153 = vadd.f32 %v151, %v152
    %s154 = vtos %v153
    %s155 = scalar_lea.smem [#allocation8], 0
    %156 = sst [smem:[%s155]] %s154
    // Predicated region
    $region26: #{tpu_custom_call.1} parent=1 // pred_check
      _
    $region27: #{tpu_custom_call.1} parent=1 // pred_check_branch
      %158 = sbr.rel (0) target = $region29
    $region28: #{tpu_custom_call.1} parent=1 // pred_region
      %160 = vsyncadd [#allocation4], 0
      %s162 = sshll.u32 %s3, 4
      %s163 = int_to_ptr.hbm [resolvable:$true] %s162
      %165 = dma.smem_to_hbm [#allocation8], 16, %s163, [#allocation4]
    $region29: #{tpu_custom_call.1} parent=1 // pred_fallthru
      _
    // Predicated region
    $region30: #{tpu_custom_call.1} parent=1 // pred_check
      _
    $region31: #{tpu_custom_call.1} parent=1 // pred_check_branch
      %167 = sbr.rel (0) target = $region33
    $region32: #{tpu_custom_call.1} parent=1 // pred_region
      %169 = dma.done [#allocation4], 16
    $region33: #{tpu_custom_call.1} parent=1 // pred_fallthru
      _
    %170 = sfence
    %171 = vsyncpa [#allocation3], 1
    %172 = vsyncpa [#allocation6], 1
    %173 = vsyncpa [#allocation4], 1

</llo_original>
